<compile_context>
chip_gen: v7x
topology: tpu7x:2x2x1
jax: 0.10.0
libtpu: 0.0.40
codegen_flags: <defaults>
</compile_context>

<pallas_src>
import numpy as np
import jax
import jax.numpy as jnp
from jax.experimental import pallas as pl
from jax.experimental.pallas import tpu as pltpu


_LANE = 512          # lane width of the flattened slab (multiple of 128)
_TM_TARGET = 1024    # rows per block -> 1024 * 512 * 4 B = 2 MiB per input block
_NUM_PARTS = 2       # leading "parallel" grid axis (uses both TCs on v7x)


def _round_up(x, m):
    return ((x + m - 1) // m) * m


def _simple_loss_kernel(o_ref, n_ref, out_ref, acc_ref):
    k = pl.program_id(1)

    @pl.when(k == 0)
    def _():
        acc_ref[...] = jnp.zeros_like(acc_ref)

    # Steady state: elementwise VPU work only (no cross-lane reduce, no SMEM
    # scalar read-modify-write per step).
    diff = n_ref[...] - o_ref[...]
    acc_ref[...] += diff * diff

    @pl.when(k == pl.num_programs(1) - 1)
    def _():
        # One cross-lane/sublane reduce per partition, at the very end.
        partial = jnp.sum(acc_ref[...])
        out_ref[...] = jnp.full(out_ref.shape, partial, dtype=out_ref.dtype)


def simple_loss(outputs, noises):
    assert outputs.shape == noises.shape
    outputs = outputs.astype(jnp.float32)
    noises = noises.astype(jnp.float32)

    batch = outputs.shape[0]
    total = int(np.prod(outputs.shape))

    L = _LANE
    P = _NUM_PARTS

    # Row count of the flattened slab and rows-per-block (multiple of 8,
    # capped at _TM_TARGET so a block never exceeds ~2 MiB regardless of D).
    m_raw = pl.cdiv(total, L)
    tm = min(_TM_TARGET, _round_up(pl.cdiv(m_raw, P), 8))
    m = P * tm * pl.cdiv(m_raw, P * tm)          # padded row count
    k_steps = m // (P * tm)                      # reduction steps per partition

    # Glue: flatten + zero-pad both operands identically (zero padding
    # contributes zero to the squared-difference sum).
    pad = m * L - total
    o_flat = outputs.reshape(-1)
    n_flat = noises.reshape(-1)
    if pad:
        o_flat = jnp.pad(o_flat, (0, pad))
        n_flat = jnp.pad(n_flat, (0, pad))
    o2 = o_flat.reshape(m, L)
    n2 = n_flat.reshape(m, L)

    in_map = lambda p, k: (p * k_steps + k, 0)   # partition p owns row-blocks [p*K, (p+1)*K)

    partials = pl.pallas_call(
        _simple_loss_kernel,
        out_shape=jax.ShapeDtypeStruct((P, 8, 128), jnp.float32),
        grid_spec=pltpu.PrefetchScalarGridSpec(
            num_scalar_prefetch=0,
            grid=(P, k_steps),
            in_specs=[
                pl.BlockSpec((tm, L), in_map),
                pl.BlockSpec((tm, L), in_map),
            ],
            out_specs=pl.BlockSpec((1, 8, 128), lambda p, k: (p, 0, 0)),
            scratch_shapes=[pltpu.VMEM((tm, L), jnp.float32)],
        ),
        compiler_params=pltpu.CompilerParams(
            dimension_semantics=("parallel", "arbitrary"),
        ),
        cost_estimate=pl.CostEstimate(
            flops=3 * m * L,
            transcendentals=0,
            bytes_accessed=2 * m * L * 4 + P * 8 * 128 * 4,
        ),
    )(o2, n2)

    # Tiny epilogue: combine per-partition partial sums and take the batch
    # mean.  Each partition's scalar is replicated across its (8,128) tile.
    loss = jnp.sum(partials[:, 0, 0]) / jnp.float32(batch)
    return loss


def _reference(outputs, noises):
    return jnp.mean(jnp.sum((noises - outputs) ** 2, axis=(1, 2, 3)))


if __name__ == "__main__":
    key = jax.random.PRNGKey(0)
    k1, k2 = jax.random.split(key)
    B, C, H, W = 2, 4, 16, 16
    outputs = jax.random.normal(k1, (B, C, H, W), dtype=jnp.float32)
    noises = jax.random.normal(k2, (B, C, H, W), dtype=jnp.float32)

    loss = simple_loss(outputs, noises)
    jax.block_until_ready(loss)

    ref = _reference(outputs, noises)
    assert loss.shape == () and loss.dtype == jnp.float32
    np.testing.assert_allclose(np.asarray(loss), np.asarray(ref), rtol=1e-5, atol=1e-5)

    print("KERNEL_OK")
</pallas_src>

<mosaic_0001>
module attributes {stable_mosaic.version = 11 : i64} {
  func.func @_simple_loss_kernel(%arg0: i32, %arg1: i32, %arg2: memref<8x512xf32, #tpu.memory_space<vmem>>, %arg3: memref<8x512xf32, #tpu.memory_space<vmem>>, %arg4: memref<1x8x128xf32, #tpu.memory_space<vmem>>, %arg5: memref<8x512xf32, #tpu.memory_space<vmem>>) attributes {dimension_semantics = [#tpu.dimension_semantics<parallel>, #tpu.dimension_semantics<arbitrary>], iteration_bounds = array<i64: 2, 1>, scalar_prefetch = 0 : i64, scratch_operands = 1 : i64, tpu.core_type = #tpu.core_type<tc>, window_params = [{transform_indices = @transform_0, window_bounds = array<i64: 8, 512>}, {transform_indices = @transform_1, window_bounds = array<i64: 8, 512>}, {transform_indices = @transform_2, window_bounds = array<i64: 1, 8, 128>}]} {
    %c0_i32 = arith.constant 0 : i32
    %0 = arith.cmpi eq, %arg1, %c0_i32 : i32
    %1 = arith.extui %0 : i1 to i32
    %c0_i32_0 = arith.constant 0 : i32
    %2 = arith.cmpi ne, %1, %c0_i32_0 : i32
    scf.if %2 {
      %cst = arith.constant 0.000000e+00 : f32
      %13 = vector.broadcast %cst : f32 to vector<8x512xf32>
      %c0_10 = arith.constant 0 : index
      %c0_11 = arith.constant 0 : index
      %14 = vector.load %arg5[%c0_10, %c0_11] : memref<8x512xf32, #tpu.memory_space<vmem>>, vector<8x512xf32>
      tpu.vector_store %arg5[%c0_10, %c0_11], %13 {strides = array<i32>} : memref<8x512xf32, #tpu.memory_space<vmem>>, vector<8x512xf32>,
    } else {
    }
    %c0 = arith.constant 0 : index
    %c0_1 = arith.constant 0 : index
    %3 = vector.load %arg3[%c0, %c0_1] : memref<8x512xf32, #tpu.memory_space<vmem>>, vector<8x512xf32>
    %c0_2 = arith.constant 0 : index
    %c0_3 = arith.constant 0 : index
    %4 = vector.load %arg2[%c0_2, %c0_3] : memref<8x512xf32, #tpu.memory_space<vmem>>, vector<8x512xf32>
    %5 = arith.subf %3, %4 : vector<8x512xf32>
    %c0_4 = arith.constant 0 : index
    %c0_5 = arith.constant 0 : index
    %6 = vector.load %arg5[%c0_4, %c0_5] : memref<8x512xf32, #tpu.memory_space<vmem>>, vector<8x512xf32>
    %7 = arith.mulf %5, %5 : vector<8x512xf32>
    %8 = arith.addf %6, %7 : vector<8x512xf32>
    %c0_6 = arith.constant 0 : index
    %c0_7 = arith.constant 0 : index
    %9 = vector.load %arg5[%c0_6, %c0_7] : memref<8x512xf32, #tpu.memory_space<vmem>>, vector<8x512xf32>
    tpu.vector_store %arg5[%c0_6, %c0_7], %8 {strides = array<i32>} : memref<8x512xf32, #tpu.memory_space<vmem>>, vector<8x512xf32>,
    %c0_i32_8 = arith.constant 0 : i32
    %10 = arith.cmpi eq, %arg1, %c0_i32_8 : i32
    %11 = arith.extui %10 : i1 to i32
    %c0_i32_9 = arith.constant 0 : i32
    %12 = arith.cmpi ne, %11, %c0_i32_9 : i32
    scf.if %12 {
      %c0_10 = arith.constant 0 : index
      %c0_11 = arith.constant 0 : index
      %13 = vector.load %arg5[%c0_10, %c0_11] : memref<8x512xf32, #tpu.memory_space<vmem>>, vector<8x512xf32>
      %14 = vector.shape_cast %13 : vector<8x512xf32> to vector<1x8x512xf32>
      %cst = arith.constant dense<0.000000e+00> : vector<1xf32>
      %15 = vector.multi_reduction <add>, %14, %cst [1, 2] : vector<1x8x512xf32> to vector<1xf32>
      %16 = vector.shape_cast %15 : vector<1xf32> to vector<1x1x1xf32>
      %17 = vector.extract %16[0, 0, 0] : f32 from vector<1x1x1xf32>
      %18 = vector.broadcast %17 : f32 to vector<1x8x128xf32>
      %c0_12 = arith.constant 0 : index
      %c0_13 = arith.constant 0 : index
      %c0_14 = arith.constant 0 : index
      %19 = vector.load %arg4[%c0_12, %c0_13, %c0_14] : memref<1x8x128xf32, #tpu.memory_space<vmem>>, vector<1x8x128xf32>
      tpu.vector_store %arg4[%c0_12, %c0_13, %c0_14], %18 {strides = array<i32>} : memref<1x8x128xf32, #tpu.memory_space<vmem>>, vector<1x8x128xf32>,
    } else {
    }
    return
  }
  func.func @transform_0(%arg0: i32, %arg1: i32) -> (i32, i32) {
    %c1_i32 = arith.constant 1 : i32
    %0 = arith.muli %arg0, %c1_i32 : i32
    %1 = arith.addi %0, %arg1 : i32
    %c0_i32 = arith.constant 0 : i32
    %c0_i32_0 = arith.constant 0 : i32
    return %1, %c0_i32 : i32, i32
  }
  func.func @transform_1(%arg0: i32, %arg1: i32) -> (i32, i32) {
    %c1_i32 = arith.constant 1 : i32
    %0 = arith.muli %arg0, %c1_i32 : i32
    %1 = arith.addi %0, %arg1 : i32
    %c0_i32 = arith.constant 0 : i32
    %c0_i32_0 = arith.constant 0 : i32
    return %1, %c0_i32 : i32, i32
  }
  func.func @transform_2(%arg0: i32, %arg1: i32) -> (i32, i32, i32) {
    %c0_i32 = arith.constant 0 : i32
    %c0_i32_0 = arith.constant 0 : i32
    %c0_i32_1 = arith.constant 0 : i32
    return %arg0, %c0_i32, %c0_i32_0 : i32, i32, i32
  }
}

</mosaic_0001>

<llo_original>
// kernel: tpu_custom_call.1
$region0: #{tpu_custom_call.1}
  #allocation0 [shape = 'u32[]', space=smem, size = 0x4, offset = 0x4, fixed_abs, tag = 'smem constant byte address 0x4 - core index']
  #allocation1 [shape = 'u32[144,128]{1,0:T(1,128)}', space=vmem, size = 0x12000, scoped, tag = 'internal scratch']
  #allocation2 [shape = 'f32[8,512]{1,0:T(8,128)}', space=vmem, size = 0x4000, scoped, tag = 'scratch operand']
  %s0 = inlined_call_operand.hbm [shape: f32[16,512], index: 0, kind: input, shape index: {}]
  %s1 = inlined_call_operand.hbm [shape: f32[16,512], index: 1, kind: input, shape index: {}]
  %s2 = inlined_call_operand.hbm [shape: f32[2,8,128], index: 2, kind: output, shape index: {}]
  %s3 = sld [smem:[#allocation0]]
  $region57: #{tpu_custom_call.1} parent=0
    _
  %s5 = ssub.s32 1, %s3
  %s6 = scalar_select 0, %s5, %s3
  $region1: #{tpu_custom_call.1} parent=0
    #allocation3 [shape = 'u8[32768]{0}', space=vmem, size = 0x8000, scoped, tag = 'input window, operand 0']
    #allocation4 [shape = 's32[2]{0}', space=sflag, size = 0x8, scoped, tag = 'scoped memory for tpu_custom_call.1']
    #allocation5 [shape = 's32[2]{0}', space=sflag, size = 0x8, scoped, tag = 'scoped memory for tpu_custom_call.1']
    #allocation6 [shape = 'u8[32768]{0}', space=vmem, size = 0x8000, scoped, tag = 'input window, operand 1']
    #allocation7 [shape = 's32[2]{0}', space=sflag, size = 0x8, scoped, tag = 'scoped memory for tpu_custom_call.1']
    #allocation8 [shape = 'u8[8192]{0}', space=vmem, size = 0x2000, scoped, tag = 'output window, operand 0']
    %7 = vsyncpa [#allocation4], 0
    %s8 = scalar_lea.sflag [#allocation4], 1
    %9 = vsyncpa %s8, 0
    %10 = vsyncpa [#allocation7], 0
    %s11 = scalar_lea.sflag [#allocation7], 1
    %12 = vsyncpa %s11, 0
    %13 = vsyncpa [#allocation5], 0
    %s14 = scalar_lea.sflag [#allocation5], 1
    %15 = vsyncpa %s14, 0
    loop: start=0, step=1, limit=4
    $region2: #{tpu_custom_call.1} parent=1 // loop_pre_header
      _
    $region3: #{tpu_custom_call.1} parent=1 // loop_header
      %s17 = sphi 0, %s21
      %p18 = scmp.ge.s32.totalorder %s17, 4
      %s24 = sphi 0, %s36
      %s25 = sphi 0, %s32
      %s26 = sphi 0, %s24
      %s27 = sphi 0, %s25
      %s28 = sphi 0, %s26
      %s29 = sphi 0, %s27
      %s41 = sphi 0, %s43
      %s44 = sphi 0, %s41
      %s45 = sphi 0, %s44
      %s61 = sphi 0, %s45
      %s69 = sphi 0, %s71
      %s72 = sphi 0, %s69
      %s73 = sphi 0, %s72
      %s89 = sphi 0, %s73
      %s95 = sphi 0, %s97
      %s98 = sphi 0, %s95
      %s99 = sphi 0, %s98
      %s115 = sphi 0, %s99
    $region4: #{tpu_custom_call.1} parent=1 // loop_header_branch
      %20 = sbr.rel (%p18) target = $region8
    $region5: #{tpu_custom_call.1} parent=1 // loop_body
      %s22 = ssub.s32 %s17, 1
      %s23 = ssub.s32 %s17, 2
      %s30 = sadd.s32 1, %s25
      %p31 = scmp.ge.s32.totalorder %s30, 1
      %s32 = scalar_select %p31, 0, %s30
      %s33 = sadd.s32 1, %s24
      %s34 = scalar_select %p31, %s33, %s24
      %p35 = scmp.ge.s32.totalorder %s34, 2
      %s36 = scalar_select %p35, 0, %s34
      %s37 = sadd.s32 %s24, %s25
      %s38 = sadd.s32 %s36, %s32
      %s39 = ssub.s32 %s37, %s38
      %p40 = scmp.eq.s32.totalorder %s39, 0
      %s42 = sadd.s32 %s41, 1
      %s43 = scalar_select %p40, %s41, %s42
      %p46 = pneg %p40
      %p47 = scmp.eq.s32.totalorder %s17, 1
      %p48 = por %p46, %p47
      %p49 = scmp.ne.s32.totalorder %s41, %s44
      %p50 = scmp.eq.s32.totalorder %s17, 0
      %p51 = por %p49, %p50
      %p52 = scmp.ne.s32.totalorder %s41, %s44
      %p53 = scmp.eq.s32.totalorder %s22, 1
      %p54 = por %p52, %p53
      %p55 = scmp.ne.s32.totalorder %s44, %s45
      %p56 = scmp.eq.s32.totalorder %s22, 0
      %p57 = por %p55, %p56
      %p58 = scmp.ne.s32.totalorder %s44, %s45
      %p59 = scmp.eq.s32.totalorder %s23, 1
      %p60 = por %p58, %p59
      %p62 = scmp.ne.s32.totalorder %s45, %s61
      %p63 = scmp.eq.s32.totalorder %s23, 0
      %p64 = por %p62, %p63
      %s65 = sadd.s32 %s24, %s25
      %s66 = sadd.s32 %s36, %s32
      %s67 = ssub.s32 %s65, %s66
      %p68 = scmp.eq.s32.totalorder %s67, 0
      %s70 = sadd.s32 %s69, 1
      %s71 = scalar_select %p68, %s69, %s70
      %p74 = pneg %p68
      %p75 = scmp.eq.s32.totalorder %s17, 1
      %p76 = por %p74, %p75
      %p77 = scmp.ne.s32.totalorder %s69, %s72
      %p78 = scmp.eq.s32.totalorder %s17, 0
      %p79 = por %p77, %p78
      %p80 = scmp.ne.s32.totalorder %s69, %s72
      %p81 = scmp.eq.s32.totalorder %s22, 1
      %p82 = por %p80, %p81
      %p83 = scmp.ne.s32.totalorder %s72, %s73
      %p84 = scmp.eq.s32.totalorder %s22, 0
      %p85 = por %p83, %p84
      %p86 = scmp.ne.s32.totalorder %s72, %s73
      %p87 = scmp.eq.s32.totalorder %s23, 1
      %p88 = por %p86, %p87
      %p90 = scmp.ne.s32.totalorder %s73, %s89
      %p91 = scmp.eq.s32.totalorder %s23, 0
      %p92 = por %p90, %p91
      %s93 = ssub.s32 %s24, %s36
      %p94 = scmp.eq.s32.totalorder %s93, 0
      %s96 = sadd.s32 %s95, 1
      %s97 = scalar_select %p94, %s95, %s96
      %p100 = pneg %p94
      %p101 = scmp.eq.s32.totalorder %s17, 1
      %p102 = por %p100, %p101
      %p103 = scmp.ne.s32.totalorder %s95, %s98
      %p104 = scmp.eq.s32.totalorder %s17, 0
      %p105 = por %p103, %p104
      %p106 = scmp.ne.s32.totalorder %s95, %s98
      %p107 = scmp.eq.s32.totalorder %s22, 1
      %p108 = por %p106, %p107
      %p109 = scmp.ne.s32.totalorder %s98, %s99
      %p110 = scmp.eq.s32.totalorder %s22, 0
      %p111 = por %p109, %p110
      %p112 = scmp.ne.s32.totalorder %s98, %s99
      %p113 = scmp.eq.s32.totalorder %s23, 1
      %p114 = por %p112, %p113
      %p116 = scmp.ne.s32.totalorder %s99, %s115
      %p117 = scmp.eq.s32.totalorder %s23, 0
      %p118 = por %p116, %p117
      %p119 = scmp.le.s32.totalorder 1, %s17
      %p120 = scmp.lt.s32.totalorder %s17, 3
      %p121 = pnand %p119, %p120
      %p122 = pneg %p121
      // Predicated region
      $region9: #{tpu_custom_call.1} parent=5 // pred_check
        _
      $region10: #{tpu_custom_call.1} parent=5 // pred_check_branch
        %124 = sbr.rel (%p121) target = $region12
      $region11: #{tpu_custom_call.1} parent=5 // pred_region
        %s125 = ssub.s32 %s17, 1
      $region12: #{tpu_custom_call.1} parent=5 // pred_fallthru
        _
      %p126 = scmp.lt.s32.totalorder %s17, 2
      // Predicated region
      $region13: #{tpu_custom_call.1} parent=5 // pred_check
        %p127 = pneg %p126
      $region14: #{tpu_custom_call.1} parent=5 // pred_check_branch
        %129 = sbr.rel (%p127) target = $region16
      $region15: #{tpu_custom_call.1} parent=5 // pred_region
        // Predicated region
        $region17: #{tpu_custom_call.1} parent=15 // pred_check
          %p130 = pneg %p51
        $region18: #{tpu_custom_call.1} parent=15 // pred_check_branch
          %132 = sbr.rel (%p130) target = $region20
        $region19: #{tpu_custom_call.1} parent=15 // pred_region
          %s133 = sand.u32 %s41, 1
          %s134 = scalar_lea.sflag [#allocation4], %s133
          %s135 = sand.u32 %s41, 1
          %s136 = smul.addr %s135, 32
          %s137 = scalar_lea.vmem [#allocation3], %s136
          %s138 = sadd.s32 %s24, %s25
          %s140 = ssub.s32 512, 512
          %141 = vsyncadd %s134, %s140
          %s142 = smul.addr %s138, 4
          %s143 = smul.addr %s142, 128
          %s144 = scalar_lea.hbm %s0, %s143
          %s146 = sshll.u32 %s137, 4
          %s147 = int_to_ptr.vmem [resolvable:$true] %s146
          %149 = dma.hbm_to_vmem [thread:$0]  %s144, 512, %s147, %s134
        $region20: #{tpu_custom_call.1} parent=15 // pred_fallthru
          _
        // Predicated region
        $region21: #{tpu_custom_call.1} parent=15 // pred_check
          %p150 = pneg %p79
        $region22: #{tpu_custom_call.1} parent=15 // pred_check_branch
          %152 = sbr.rel (%p150) target = $region24
        $region23: #{tpu_custom_call.1} parent=15 // pred_region
          %s153 = sand.u32 %s69, 1
          %s154 = scalar_lea.sflag [#allocation7], %s153
          %s155 = sand.u32 %s69, 1
          %s156 = smul.addr %s155, 32
          %s157 = scalar_lea.vmem [#allocation6], %s156
          %s158 = sadd.s32 %s24, %s25
          %s160 = ssub.s32 512, 512
          %161 = vsyncadd %s154, %s160
          %s162 = smul.addr %s158, 4
          %s163 = smul.addr %s162, 128
          %s164 = scalar_lea.hbm %s1, %s163
          %s166 = sshll.u32 %s157, 4
          %s167 = int_to_ptr.vmem [resolvable:$true] %s166
          %169 = dma.hbm_to_vmem [thread:$0]  %s164, 512, %s167, %s154
        $region24: #{tpu_custom_call.1} parent=15 // pred_fallthru
          _
      $region16: #{tpu_custom_call.1} parent=5 // pred_fallthru
        _
      %p170 = scmp.le.s32.totalorder 1, %s17
      %p171 = scmp.lt.s32.totalorder %s17, 3
      %p172 = pnand %p170, %p171
      %p173 = pneg %p172
      // Predicated region
      $region25: #{tpu_custom_call.1} parent=5 // pred_check
        _
      $region26: #{tpu_custom_call.1} parent=5 // pred_check_branch
        %175 = sbr.rel (%p172) target = $region28
      $region27: #{tpu_custom_call.1} parent=5 // pred_region
        %s176 = ssub.s32 %s17, 1
        %s177 = sand.u32 %s44, 1
        %s178 = scalar_lea.sflag [#allocation4], %s177
        %s179 = sand.u32 %s44, 1
        %s180 = smul.addr %s179, 32
        %s181 = scalar_lea.vmem [#allocation3], %s180
        // Predicated region
        $region29: #{tpu_custom_call.1} parent=27 // pred_check
          %p182 = pneg %p57
        $region30: #{tpu_custom_call.1} parent=27 // pred_check_branch
          %184 = sbr.rel (%p182) target = $region32
        $region31: #{tpu_custom_call.1} parent=27 // pred_region
          %185 = dma.done %s178, 512
        $region32: #{tpu_custom_call.1} parent=27 // pred_fallthru
          _
        %s186 = sand.u32 %s72, 1
        %s187 = scalar_lea.sflag [#allocation7], %s186
        %s188 = sand.u32 %s72, 1
        %s189 = smul.addr %s188, 32
        %s190 = scalar_lea.vmem [#allocation6], %s189
        // Predicated region
        $region33: #{tpu_custom_call.1} parent=27 // pred_check
          %p191 = pneg %p85
        $region34: #{tpu_custom_call.1} parent=27 // pred_check_branch
          %193 = sbr.rel (%p191) target = $region36
        $region35: #{tpu_custom_call.1} parent=27 // pred_region
          %194 = dma.done %s187, 512
        $region36: #{tpu_custom_call.1} parent=27 // pred_fallthru
          _
        %s195 = sand.u32 %s44, 1
        %s196 = scalar_lea.sflag [#allocation4], %s195
        %s197 = sand.u32 %s44, 1
        %s198 = smul.addr %s197, 32
        %s199 = scalar_lea.vmem [#allocation3], %s198
        %p200 = pneg %p57
        %p201 = pneg %p54
        %s202 = sand.u32 %s72, 1
        %s203 = scalar_lea.sflag [#allocation7], %s202
        %s204 = sand.u32 %s72, 1
        %s205 = smul.addr %s204, 32
        %s206 = scalar_lea.vmem [#allocation6], %s205
        %p207 = pneg %p85
        %p208 = pneg %p82
        %p209 = pneg %p111
        %p210 = pneg %p108
        %s211 = sand.u32 %s98, 1
        %s212 = scalar_lea.sflag [#allocation5], %s211
        %s213 = sand.u32 %s98, 1
        %s214 = smul.addr %s213, 8
        %s215 = scalar_lea.vmem [#allocation8], %s214
        %s216 = sadd.s32 %s26, %s27
        %s217 = sadd.s32 %s26, %s27
        %p218 = scmp.eq.s32.totalorder %s27, 0
        // Predicated region
        $region37: #{tpu_custom_call.1} parent=27 // pred_check
          %p219 = pneg %p218
        $region38: #{tpu_custom_call.1} parent=27 // pred_check_branch
          %221 = sbr.rel (%p219) target = $region40
        $region39: #{tpu_custom_call.1} parent=27 // pred_region
          %222 = vst [vmem:[#allocation2] sm:$0xff] 0.0
          %223 = vst [vmem:[#allocation2 + $0x8] sm:$0xff] 0.0
          %224 = vst [vmem:[#allocation2 + $0x10] sm:$0xff] 0.0
          %225 = vst [vmem:[#allocation2 + $0x18] sm:$0xff] 0.0
        $region40: #{tpu_custom_call.1} parent=27 // pred_fallthru
          _
        %v226 = vld [vmem:[%s190] sm:$0xff]
        %v227 = vld [vmem:[%s190 + $0x8] sm:$0xff]
        %v228 = vld [vmem:[%s190 + $0x10] sm:$0xff]
        %v229 = vld [vmem:[%s190 + $0x18] sm:$0xff]
        %v230 = vld [vmem:[%s181] sm:$0xff]
        %v231 = vld [vmem:[%s181 + $0x8] sm:$0xff]
        %v232 = vld [vmem:[%s181 + $0x10] sm:$0xff]
        %v233 = vld [vmem:[%s181 + $0x18] sm:$0xff]
        %v234 = vsub.f32 %v226, %v230
        %v235 = vsub.f32 %v227, %v231
        %v236 = vsub.f32 %v228, %v232
        %v237 = vsub.f32 %v229, %v233
        %v238 = vld [vmem:[#allocation2] sm:$0xff]
        %v239 = vld [vmem:[#allocation2 + $0x8] sm:$0xff]
        %v240 = vld [vmem:[#allocation2 + $0x10] sm:$0xff]
        %v241 = vld [vmem:[#allocation2 + $0x18] sm:$0xff]
        %v242 = vmul.f32 %v234, %v234
        %v243 = vmul.f32 %v235, %v235
        %v244 = vmul.f32 %v236, %v236
        %v245 = vmul.f32 %v237, %v237
        %v246 = vadd.f32 %v238, %v242
        %v247 = vadd.f32 %v239, %v243
        %v248 = vadd.f32 %v240, %v244
        %v249 = vadd.f32 %v241, %v245
        %250 = vst [vmem:[#allocation2] sm:$0xff] %v246
        %251 = vst [vmem:[#allocation2 + $0x8] sm:$0xff] %v247
        %252 = vst [vmem:[#allocation2 + $0x10] sm:$0xff] %v248
        %253 = vst [vmem:[#allocation2 + $0x18] sm:$0xff] %v249
        // Predicated region
        $region41: #{tpu_custom_call.1} parent=27 // pred_check
          %p254 = pneg %p218
        $region42: #{tpu_custom_call.1} parent=27 // pred_check_branch
          %256 = sbr.rel (%p254) target = $region44
        $region43: #{tpu_custom_call.1} parent=27 // pred_region
          %v257 = vld [vmem:[#allocation2] sm:$0xff]
          %v258 = vld [vmem:[#allocation2 + $0x8] sm:$0xff]
          %v259 = vld [vmem:[#allocation2 + $0x10] sm:$0xff]
          %v260 = vld [vmem:[#allocation2 + $0x18] sm:$0xff]
          %v261 = vadd.f32 %v257, %v258
          %v262 = vadd.f32 %v261, %v259
          %v263 = vadd.f32 %v262, %v260
          %264 = vadd.xlane.f32.xlu0 %v263
          %v265 = vpop.xlane.xlu0 %264
          %v266 = vrot.slane %v265, 4
          %v267 = vadd.f32 %v265, %v266
          %v268 = vrot.slane %v267, 2
          %v269 = vadd.f32 %v267, %v268
          %v270 = vrot.slane %v269, 1
          %v271 = vadd.f32 %v269, %v270
          %s272 = vtos %v271
          %v273 = vstv %s272
          %274 = vst [vmem:[%s215] sm:$0xff] %v273
        $region44: #{tpu_custom_call.1} parent=27 // pred_fallthru
          _
        %s275 = sand.u32 %s98, 1
        %s276 = scalar_lea.sflag [#allocation5], %s275
        %s277 = sand.u32 %s98, 1
        %s278 = smul.addr %s277, 8
        %s279 = scalar_lea.vmem [#allocation8], %s278
        // Predicated region
        $region45: #{tpu_custom_call.1} parent=27 // pred_check
          %p280 = pneg %p108
        $region46: #{tpu_custom_call.1} parent=27 // pred_check_branch
          %282 = sbr.rel (%p280) target = $region48
        $region47: #{tpu_custom_call.1} parent=27 // pred_region
          %s284 = ssub.s32 128, 128
          %285 = vsyncadd %s276, %s284
          %s286 = smul.addr %s26, 128
          %s287 = scalar_lea.hbm %s2, %s286
          %s289 = sshll.u32 %s279, 4
          %s290 = int_to_ptr.vmem [resolvable:$true] %s289
          %292 = dma.vmem_to_hbm [thread:$0]  %s290, 128, %s287, %s276
        $region48: #{tpu_custom_call.1} parent=27 // pred_fallthru
          _
      $region28: #{tpu_custom_call.1} parent=5 // pred_fallthru
        _
      %p293 = scmp.le.s32.totalorder 2, %s17
      // Predicated region
      $region49: #{tpu_custom_call.1} parent=5 // pred_check
        %p294 = pneg %p293
      $region50: #{tpu_custom_call.1} parent=5 // pred_check_branch
        %296 = sbr.rel (%p294) target = $region52
      $region51: #{tpu_custom_call.1} parent=5 // pred_region
        %s297 = ssub.s32 %s17, 2
        // Predicated region
        $region53: #{tpu_custom_call.1} parent=51 // pred_check
          %p298 = pneg %p114
        $region54: #{tpu_custom_call.1} parent=51 // pred_check_branch
          %300 = sbr.rel (%p298) target = $region56
        $region55: #{tpu_custom_call.1} parent=51 // pred_region
          %s301 = sand.u32 %s99, 1
          %s302 = scalar_lea.sflag [#allocation5], %s301
          %s303 = sand.u32 %s99, 1
          %s304 = smul.addr %s303, 8
          %s305 = scalar_lea.vmem [#allocation8], %s304
          %306 = dma.done %s302, 128
        $region56: #{tpu_custom_call.1} parent=51 // pred_fallthru
          _
      $region52: #{tpu_custom_call.1} parent=5 // pred_fallthru
        _
    $region6: #{tpu_custom_call.1} parent=1 // loop_footer
      %s21 = sadd.s32 1, %s17
    $region7: #{tpu_custom_call.1} parent=1 // loop_footer_branch
      %16 = sbr.rel target = $region3
    $region8: #{tpu_custom_call.1} parent=1 // loop_exit
      _
    %307 = vsyncpa [#allocation4], 1
    %s308 = scalar_lea.sflag [#allocation4], 1
    %309 = vsyncpa %s308, 1
    %310 = vsyncpa [#allocation7], 1
    %s311 = scalar_lea.sflag [#allocation7], 1
    %312 = vsyncpa %s311, 1
    %313 = vsyncpa [#allocation5], 1
    %s314 = scalar_lea.sflag [#allocation5], 1
    %315 = vsyncpa %s314, 1

</llo_original>
